<compile_context>
chip_gen: v6e
topology: v6e:2x2x1
jax: 0.10.0
libtpu: 0.0.40
codegen_flags: <defaults>
</compile_context>

<pallas_src>
import functools

import jax
import jax.numpy as jnp
from jax import lax
from jax.experimental import pallas as pl
from jax.experimental.pallas import tpu as pltpu


def _l2_normalize(x, eps):
    # F.normalize: x / clamp_min(||x||_2, eps) along the last axis.
    n = jnp.sqrt(jnp.sum(x * x, axis=-1, keepdims=True))
    return x / jnp.maximum(n, eps)


def _semantic_head_kernel(x_ref, wcat_t_ref, bcat_t_ref, lower_t_ref,
                          cnw_ref, bk_ref, tbl_ref, out_ref, *, mxu_dtype):
    # x tile: (tm, D) float32.
    x = x_ref[...].astype(jnp.float32)
    d = x.shape[1]

    # Per-pixel inverse L2 norm as a lane-dense (1, tm) row: the D-reduction
    # goes through the MXU, the rsqrt through the EUP -> VPU only does x*x.
    ssq = lax.dot_general(jnp.ones((1, d), jnp.float32), x * x,
                          (((1,), (1,)), ((), ())),
                          preferred_element_type=jnp.float32)        # (1, tm)
    inv_n = lax.rsqrt(jnp.maximum(ssq, 1e-20))   # == 1 / max(||x||, 1e-10)

    # Transposed fused first layer (pixels on lanes):
    #   raw_t[c, m] = sum_d Wcat[d, c] * x[m, d]
    # L2 normalization deferred past the matmul: (x @ W) * inv_n == (x/||x||) @ W.
    raw_t = lax.dot_general(wcat_t_ref[...], x.astype(mxu_dtype),
                            (((1,), (1,)), ((), ())),
                            preferred_element_type=jnp.float32)      # (C, tm)
    cat_t = raw_t * inv_n + bcat_t_ref[...]
    # ReLU only for the `mid` rows: lower = -inf for lin rows, 0 for mid rows.
    z_t = jnp.maximum(cat_t, lower_t_ref[...])

    # Folded classifier: inner_t = [cn | cn@W2^T] @ [lin_t ; relu(mid)_t] + cn@b2^T.
    # (stego / kmeans-feature row norms dropped: positive scaling, argmax-invariant)
    inner_t = lax.dot_general(cnw_ref[...], z_t.astype(mxu_dtype),
                              (((1,), (0,)), ((), ())),
                              preferred_element_type=jnp.float32) + bk_ref[...]  # (K, tm)

    n_classes = inner_t.shape[0]
    # argmax over classes (sublane axis) with first-max tiebreak; all lane-dense.
    max_v = jnp.max(inner_t, axis=0, keepdims=True)                  # (1, tm)
    cls = lax.broadcasted_iota(jnp.int32, inner_t.shape, 0)          # (K, tm)
    cand = jnp.where(inner_t == max_v, cls, n_classes)
    label = jnp.min(cand, axis=0, keepdims=True)                     # (1, tm)

    # Fused pseudo_assignment lookup: one-hot select of the (K, 1) table column.
    segs = jnp.sum(jnp.where(cls == label, tbl_ref[...], 0),
                   axis=0, keepdims=True)                            # (1, tm)
    out_ref[...] = segs.astype(jnp.int32)


def _choose_tm(m, tm_target):
    """Row-tile size: exact tiles at small M (no pad), big aligned tiles else."""
    if m <= tm_target:
        half = m // 2
        if half >= 1024 and half % 1024 == 0:
            return half            # two exact tiles -> keeps both v7x TCs busy
        return m                   # single exact tile, no masking needed
    # Big tiles; the ragged last tile is masked by Pallas (no HBM pad copy).
    return max(128, (tm_target // 128) * 128)


def semantic_head_forward(features, params, *, tm_target=8192,
                          mxu_dtype=jnp.bfloat16):
    """features: (B, H, W, input_dim) float32. Returns segs_pred: (B, H, W) int32."""
    B, H, W, D = features.shape
    M = B * H * W

    x = features.reshape(M, D)
    if x.dtype != jnp.float32:
        x = x.astype(jnp.float32)

    code_dim = params["w_lin"].shape[1]
    mid_dim = params["w1"].shape[1]
    C = code_dim + mid_dim
    K = params["cluster_centers"].shape[0]

    tm = _choose_tm(M, tm_target)
    num_tiles = pl.cdiv(M, tm)

    # ---- trace-time constant folding on the tiny parameter tensors ----
    f32 = jnp.float32
    w_lin, w1, w2 = (params[k].astype(f32) for k in ("w_lin", "w1", "w2"))
    b_lin, b1, b2 = (params[k].astype(f32) for k in ("b_lin", "b1", "b2"))
    # Fused + pre-transposed first-layer weights -> kernel matmul is a clean NT.
    wcat_t = jnp.concatenate([w_lin, w1], axis=1).T.astype(mxu_dtype)        # (C, D)
    bcat_t = jnp.concatenate([b_lin, b1], axis=1).reshape(C, 1)              # (C, 1)
    lower_t = jnp.concatenate([jnp.full((code_dim, 1), -jnp.inf, f32),
                               jnp.zeros((mid_dim, 1), f32)], axis=0)        # (C, 1)
    # Classifier fold: second 1x1 conv absorbed into the normalized centers.
    cn = _l2_normalize(params["cluster_centers"].astype(f32), 1e-12)         # (K, code)
    cnw = jnp.concatenate([cn, cn @ w2.T], axis=1).astype(mxu_dtype)         # (K, C)
    bk = cn @ b2.reshape(code_dim, 1)                                        # (K, 1)
    tbl = params["pseudo_assignment"].astype(jnp.int32).reshape(K, 1)        # (K, 1)

    kernel = functools.partial(_semantic_head_kernel, mxu_dtype=mxu_dtype)

    segs = pl.pallas_call(
        kernel,
        out_shape=jax.ShapeDtypeStruct((1, M), jnp.int32),
        grid_spec=pltpu.PrefetchScalarGridSpec(
            num_scalar_prefetch=0,
            grid=(num_tiles,),
            in_specs=[
                pl.BlockSpec((tm, D), lambda i: (i, 0)),   # pixel tile (dominant stream)
                pl.BlockSpec((C, D), lambda i: (0, 0)),    # [W_lin | W1]^T
                pl.BlockSpec((C, 1), lambda i: (0, 0)),    # [b_lin | b1]^T
                pl.BlockSpec((C, 1), lambda i: (0, 0)),    # ReLU lower bounds
                pl.BlockSpec((K, C), lambda i: (0, 0)),    # [cn | cn @ W2^T]
                pl.BlockSpec((K, 1), lambda i: (0, 0)),    # cn @ b2^T
                pl.BlockSpec((K, 1), lambda i: (0, 0)),    # pseudo_assignment table
            ],
            out_specs=pl.BlockSpec((1, tm), lambda i: (0, i)),   # lane-dense labels
        ),
        compiler_params=pltpu.CompilerParams(
            dimension_semantics=("parallel",),
            vmem_limit_bytes=32 * 1024 * 1024),
    )(x, wcat_t, bcat_t, lower_t, cnw, bk, tbl)

    return segs.reshape(B, H, W)


def semantic_head_reference(features, params):
    """Pure-JAX reference mirroring the PyTorch forward (returns segs + inner)."""
    x = features.astype(jnp.float32)
    xn = _l2_normalize(x, 1e-10)
    lin = xn @ params["w_lin"] + params["b_lin"]
    mid = jnp.maximum(xn @ params["w1"] + params["b1"], 0.0)
    nl = mid @ params["w2"] + params["b2"]
    stego = _l2_normalize(lin + nl, 1e-10)
    sn = _l2_normalize(stego, 1e-12)
    cn = _l2_normalize(params["cluster_centers"], 1e-12)
    inner = jnp.einsum("bhwc,kc->bhwk", sn, cn)
    labels = jnp.argmax(inner, axis=-1)
    return jnp.take(params["pseudo_assignment"], labels), inner


if __name__ == "__main__":
    key = jax.random.PRNGKey(0)
    B, H, W = 2, 16, 16
    input_dim, code_dim = 32, 16          # mid_channels defaults to input_dim
    n_classes, gt_classes = 16, 8

    ks = jax.random.split(key, 8)
    params = {
        # Conv2d 1x1 weights stored pre-transposed as (in, out) for x @ W.
        "w_lin": jax.random.normal(ks[0], (input_dim, code_dim), jnp.float32) * 0.2,
        "b_lin": jax.random.normal(ks[1], (1, code_dim), jnp.float32) * 0.05,
        "w1": jax.random.normal(ks[2], (input_dim, input_dim), jnp.float32) * 0.2,
        "b1": jax.random.normal(ks[3], (1, input_dim), jnp.float32) * 0.05,
        "w2": jax.random.normal(ks[4], (input_dim, code_dim), jnp.float32) * 0.2,
        "b2": jax.random.normal(ks[5], (1, code_dim), jnp.float32) * 0.05,
        # torch.randn(n_classes, code_dim)
        "cluster_centers": jax.random.normal(ks[6], (n_classes, code_dim), jnp.float32),
        # register_buffer: arange(n_classes) % gt_classes
        "pseudo_assignment": (jnp.arange(n_classes, dtype=jnp.int32) % gt_classes),
    }

    features = jax.random.normal(ks[7], (B, H, W, input_dim), jnp.float32)

    ref_segs, ref_inner = semantic_head_reference(features, params)
    top2 = lax.top_k(ref_inner, 2)[0]
    margin = top2[..., 0] - top2[..., 1]

    # Default config: big single tile, bf16 MXU operands -> check decisive pixels.
    segs_pred = jax.block_until_ready(semantic_head_forward(features, params))
    assert segs_pred.shape == (B, H, W)
    assert segs_pred.dtype == jnp.int32
    ok = jnp.where(margin > 5e-2, segs_pred == ref_segs, True)
    assert bool(jnp.all(ok)), "bf16 kernel mismatch vs reference on decisive pixels"

    # Multi-tile + ragged-tail + f32-MXU config exercises the masked edge block.
    segs_f32 = jax.block_until_ready(
        semantic_head_forward(features, params, tm_target=384,
                              mxu_dtype=jnp.float32))
    ok32 = jnp.where(margin > 1e-4, segs_f32 == ref_segs, True)
    assert bool(jnp.all(ok32)), "f32 kernel mismatch vs reference on decisive pixels"

    print("KERNEL_OK")
</pallas_src>

<mosaic_0001>
module attributes {stable_mosaic.version = 11 : i64} {
  func.func @_semantic_head_kernel(%arg0: i32, %arg1: memref<512x32xf32, #tpu.memory_space<vmem>>, %arg2: memref<48x32xbf16, #tpu.memory_space<vmem>>, %arg3: memref<48x1xf32, #tpu.memory_space<vmem>>, %arg4: memref<48x1xf32, #tpu.memory_space<vmem>>, %arg5: memref<16x48xbf16, #tpu.memory_space<vmem>>, %arg6: memref<16x1xf32, #tpu.memory_space<vmem>>, %arg7: memref<16x1xi32, #tpu.memory_space<vmem>>, %arg8: memref<1x512xi32, #tpu.memory_space<vmem>>) attributes {dimension_semantics = [#tpu.dimension_semantics<parallel>], iteration_bounds = array<i64: 1>, scalar_prefetch = 0 : i64, scratch_operands = 0 : i64, tpu.core_type = #tpu.core_type<tc>, window_params = [{transform_indices = @transform_0, window_bounds = array<i64: 512, 32>}, {pipeline_mode = #tpu.pipeline_mode<synchronous>, transform_indices = @transform_1, window_bounds = array<i64: 48, 32>}, {pipeline_mode = #tpu.pipeline_mode<synchronous>, transform_indices = @transform_2, window_bounds = array<i64: 48, 1>}, {pipeline_mode = #tpu.pipeline_mode<synchronous>, transform_indices = @transform_3, window_bounds = array<i64: 48, 1>}, {pipeline_mode = #tpu.pipeline_mode<synchronous>, transform_indices = @transform_4, window_bounds = array<i64: 16, 48>}, {pipeline_mode = #tpu.pipeline_mode<synchronous>, transform_indices = @transform_5, window_bounds = array<i64: 16, 1>}, {pipeline_mode = #tpu.pipeline_mode<synchronous>, transform_indices = @transform_6, window_bounds = array<i64: 16, 1>}, {transform_indices = @transform_7, window_bounds = array<i64: 1, 512>}]} {
    %c0 = arith.constant 0 : index
    %c0_0 = arith.constant 0 : index
    %0 = vector.load %arg1[%c0, %c0_0] : memref<512x32xf32, #tpu.memory_space<vmem>>, vector<512x32xf32>
    %cst = arith.constant 1.000000e+00 : f32
    %1 = vector.broadcast %cst : f32 to vector<1x32xf32>
    %2 = arith.mulf %0, %0 : vector<512x32xf32>
    %cst_1 = arith.constant dense<0.000000e+00> : vector<1x512xf32>
    %3 = tpu.matmul %1, %2, %cst_1 {dimension_numbers = #tpu.dot_dimension_numbers<[1], [1], [0], [0], [0, 0, 1, 0], [], []>} : vector<1x32xf32>, vector<512x32xf32>, vector<1x512xf32> -> vector<1x512xf32>
    %cst_2 = arith.constant 9.99999968E-21 : f32
    %4 = vector.broadcast %cst_2 : f32 to vector<1x512xf32>
    %5 = arith.maximumf %3, %4 : vector<1x512xf32>
    %6 = math.rsqrt %5 : vector<1x512xf32>
    %c0_3 = arith.constant 0 : index
    %c0_4 = arith.constant 0 : index
    %7 = vector.load %arg2[%c0_3, %c0_4] : memref<48x32xbf16, #tpu.memory_space<vmem>>, vector<48x32xbf16>
    %8 = arith.truncf %0 : vector<512x32xf32> to vector<512x32xbf16>
    %cst_5 = arith.constant dense<0.000000e+00> : vector<48x512xf32>
    %9 = tpu.matmul %7, %8, %cst_5 {dimension_numbers = #tpu.dot_dimension_numbers<[1], [1], [0], [0], [0, 0, 1, 0], [], []>} : vector<48x32xbf16>, vector<512x32xbf16>, vector<48x512xf32> -> vector<48x512xf32>
    %10 = vector.broadcast %6 : vector<1x512xf32> to vector<48x512xf32>
    %11 = arith.mulf %9, %10 : vector<48x512xf32>
    %c0_6 = arith.constant 0 : index
    %c0_7 = arith.constant 0 : index
    %12 = vector.load %arg3[%c0_6, %c0_7] : memref<48x1xf32, #tpu.memory_space<vmem>>, vector<48x1xf32>
    %13 = vector.broadcast %12 : vector<48x1xf32> to vector<48x512xf32>
    %14 = arith.addf %11, %13 : vector<48x512xf32>
    %c0_8 = arith.constant 0 : index
    %c0_9 = arith.constant 0 : index
    %15 = vector.load %arg4[%c0_8, %c0_9] : memref<48x1xf32, #tpu.memory_space<vmem>>, vector<48x1xf32>
    %16 = vector.broadcast %15 : vector<48x1xf32> to vector<48x512xf32>
    %17 = arith.maximumf %14, %16 : vector<48x512xf32>
    %c0_10 = arith.constant 0 : index
    %c0_11 = arith.constant 0 : index
    %18 = vector.load %arg5[%c0_10, %c0_11] : memref<16x48xbf16, #tpu.memory_space<vmem>>, vector<16x48xbf16>
    %19 = arith.truncf %17 : vector<48x512xf32> to vector<48x512xbf16>
    %cst_12 = arith.constant dense<0.000000e+00> : vector<16x512xf32>
    %20 = tpu.matmul %18, %19, %cst_12 {dimension_numbers = #tpu.dot_dimension_numbers<[1], [0], [0], [1], [0, 0, 1, 1], [], []>} : vector<16x48xbf16>, vector<48x512xbf16>, vector<16x512xf32> -> vector<16x512xf32>
    %c0_13 = arith.constant 0 : index
    %c0_14 = arith.constant 0 : index
    %21 = vector.load %arg6[%c0_13, %c0_14] : memref<16x1xf32, #tpu.memory_space<vmem>>, vector<16x1xf32>
    %22 = vector.broadcast %21 : vector<16x1xf32> to vector<16x512xf32>
    %23 = arith.addf %20, %22 : vector<16x512xf32>
    %cst_15 = arith.constant dense<0xFF800000> : vector<512xf32>
    %24 = vector.multi_reduction <maximumf>, %23, %cst_15 [0] : vector<16x512xf32> to vector<512xf32>
    %25 = vector.shape_cast %24 : vector<512xf32> to vector<1x512xf32>
    %26 = tpu.iota {dimensions = array<i32: 0>} : vector<16x512xi32>
    %27 = vector.broadcast %25 : vector<1x512xf32> to vector<16x512xf32>
    %28 = arith.cmpf oeq, %23, %27 : vector<16x512xf32>
    %c16_i32 = arith.constant 16 : i32
    %29 = vector.broadcast %c16_i32 : i32 to vector<16x512xi32>
    %30 = arith.select %28, %26, %29 : vector<16x512xi1>, vector<16x512xi32>
    %cst_16 = arith.constant dense<2147483647> : vector<512xi32>
    %31 = vector.multi_reduction <minsi>, %30, %cst_16 [0] : vector<16x512xi32> to vector<512xi32>
    %32 = vector.shape_cast %31 : vector<512xi32> to vector<1x512xi32>
    %33 = vector.broadcast %32 : vector<1x512xi32> to vector<16x512xi32>
    %34 = arith.cmpi eq, %26, %33 : vector<16x512xi32>
    %c0_17 = arith.constant 0 : index
    %c0_18 = arith.constant 0 : index
    %35 = vector.load %arg7[%c0_17, %c0_18] : memref<16x1xi32, #tpu.memory_space<vmem>>, vector<16x1xi32>
    %c0_i32 = arith.constant 0 : i32
    %36 = vector.shape_cast %35 : vector<16x1xi32> to vector<16x1xi32>
    %37 = vector.broadcast %36 : vector<16x1xi32> to vector<16x512xi32>
    %38 = vector.broadcast %c0_i32 : i32 to vector<16x512xi32>
    %39 = arith.select %34, %37, %38 : vector<16x512xi1>, vector<16x512xi32>
    %cst_19 = arith.constant dense<0> : vector<512xi32>
    %40 = vector.multi_reduction <add>, %39, %cst_19 [0] : vector<16x512xi32> to vector<512xi32>
    %41 = vector.shape_cast %40 : vector<512xi32> to vector<1x512xi32>
    %c0_20 = arith.constant 0 : index
    %c0_21 = arith.constant 0 : index
    %42 = vector.load %arg8[%c0_20, %c0_21] : memref<1x512xi32, #tpu.memory_space<vmem>>, vector<1x512xi32>
    tpu.vector_store %arg8[%c0_20, %c0_21], %41 {strides = array<i32>} : memref<1x512xi32, #tpu.memory_space<vmem>>, vector<1x512xi32>,
    return
  }
  func.func @transform_0(%arg0: i32) -> (i32, i32) {
    %c0_i32 = arith.constant 0 : i32
    %c0_i32_0 = arith.constant 0 : i32
    return %arg0, %c0_i32 : i32, i32
  }
  func.func @transform_1(%arg0: i32) -> (i32, i32) {
    %c0_i32 = arith.constant 0 : i32
    %c0_i32_0 = arith.constant 0 : i32
    %c0_i32_1 = arith.constant 0 : i32
    return %c0_i32, %c0_i32_0 : i32, i32
  }
  func.func @transform_2(%arg0: i32) -> (i32, i32) {
    %c0_i32 = arith.constant 0 : i32
    %c0_i32_0 = arith.constant 0 : i32
    %c0_i32_1 = arith.constant 0 : i32
    return %c0_i32, %c0_i32_0 : i32, i32
  }
  func.func @transform_3(%arg0: i32) -> (i32, i32) {
    %c0_i32 = arith.constant 0 : i32
    %c0_i32_0 = arith.constant 0 : i32
    %c0_i32_1 = arith.constant 0 : i32
    return %c0_i32, %c0_i32_0 : i32, i32
  }
  func.func @transform_4(%arg0: i32) -> (i32, i32) {
    %c0_i32 = arith.constant 0 : i32
    %c0_i32_0 = arith.constant 0 : i32
    %c0_i32_1 = arith.constant 0 : i32
    return %c0_i32, %c0_i32_0 : i32, i32
  }
  func.func @transform_5(%arg0: i32) -> (i32, i32) {
    %c0_i32 = arith.constant 0 : i32
    %c0_i32_0 = arith.constant 0 : i32
    %c0_i32_1 = arith.constant 0 : i32
    return %c0_i32, %c0_i32_0 : i32, i32
  }
  func.func @transform_6(%arg0: i32) -> (i32, i32) {
    %c0_i32 = arith.constant 0 : i32
    %c0_i32_0 = arith.constant 0 : i32
    %c0_i32_1 = arith.constant 0 : i32
    return %c0_i32, %c0_i32_0 : i32, i32
  }
  func.func @transform_7(%arg0: i32) -> (i32, i32) {
    %c0_i32 = arith.constant 0 : i32
    %c0_i32_0 = arith.constant 0 : i32
    return %c0_i32, %arg0 : i32, i32
  }
}

</mosaic_0001>

<llo_original>
// kernel: tpu_custom_call.1
$region0: #{tpu_custom_call.1}
  #allocation0 [shape = 'u32[]', space=smem, size = 0x4, offset = 0x4, fixed_abs, tag = 'smem constant byte address 0x4 - core index']
  #allocation1 [shape = 'u32[144,128]{1,0:T(1,128)}', space=vmem, size = 0x12000, scoped, tag = 'internal scratch']
  %s0 = inlined_call_operand.vmem [shape: f32[512,32], index: 0, kind: input, shape index: {}]
  %s1 = inlined_call_operand.vmem [shape: bf16[48,32], index: 1, kind: input, shape index: {}]
  %s2 = inlined_call_operand.vmem [shape: f32[48,1], index: 2, kind: input, shape index: {}]
  %s3 = inlined_call_operand.vmem [shape: f32[48,1], index: 3, kind: input, shape index: {}]
  %s4 = inlined_call_operand.vmem [shape: bf16[16,48], index: 4, kind: input, shape index: {}]
  %s5 = inlined_call_operand.vmem [shape: f32[16,1], index: 5, kind: input, shape index: {}]
  %s6 = inlined_call_operand.vmem [shape: s32[16,1], index: 6, kind: input, shape index: {}]
  %s7 = inlined_call_operand.hbm [shape: s32[1,512], index: 7, kind: output, shape index: {}]
  %s8 = sld [smem:[#allocation0]]
  $region38: #{tpu_custom_call.1} parent=0
    _
  %s10 = ssub.s32 1, %s8
  %s11 = scalar_select 0, %s10, %s8
  $region1: #{tpu_custom_call.1} parent=0
    #allocation2 [shape = 'u8[2048]{0}', space=vmem, size = 0x800, scoped, tag = 'output window, operand 0, single buffered']
    #allocation3 [shape = 's32[1]{0}', space=sflag, size = 0x4, scoped, tag = 'scoped memory for tpu_custom_call.1']
    %12 = vsyncpa [#allocation3], 0
    // Predicated region
    $region2: #{tpu_custom_call.1} parent=1 // pred_check
      _
    $region3: #{tpu_custom_call.1} parent=1 // pred_check_branch
      %14 = sbr.rel (0) target = $region5
    $region4: #{tpu_custom_call.1} parent=1 // pred_region
      _
    $region5: #{tpu_custom_call.1} parent=1 // pred_fallthru
      _
    // Predicated region
    $region6: #{tpu_custom_call.1} parent=1 // pred_check
      _
    $region7: #{tpu_custom_call.1} parent=1 // pred_check_branch
      %16 = sbr.rel (0) target = $region9
    $region8: #{tpu_custom_call.1} parent=1 // pred_region
      _
    $region9: #{tpu_custom_call.1} parent=1 // pred_fallthru
      _
    // Predicated region
    $region10: #{tpu_custom_call.1} parent=1 // pred_check
      _
    $region11: #{tpu_custom_call.1} parent=1 // pred_check_branch
      %18 = sbr.rel (0) target = $region13
    $region12: #{tpu_custom_call.1} parent=1 // pred_region
      _
    $region13: #{tpu_custom_call.1} parent=1 // pred_fallthru
      _
    // Predicated region
    $region14: #{tpu_custom_call.1} parent=1 // pred_check
      _
    $region15: #{tpu_custom_call.1} parent=1 // pred_check_branch
      %20 = sbr.rel (0) target = $region17
    $region16: #{tpu_custom_call.1} parent=1 // pred_region
      _
    $region17: #{tpu_custom_call.1} parent=1 // pred_fallthru
      _
    // Predicated region
    $region18: #{tpu_custom_call.1} parent=1 // pred_check
      _
    $region19: #{tpu_custom_call.1} parent=1 // pred_check_branch
      %22 = sbr.rel (0) target = $region21
    $region20: #{tpu_custom_call.1} parent=1 // pred_region
      _
    $region21: #{tpu_custom_call.1} parent=1 // pred_fallthru
      _
    // Predicated region
    $region22: #{tpu_custom_call.1} parent=1 // pred_check
      _
    $region23: #{tpu_custom_call.1} parent=1 // pred_check_branch
      %24 = sbr.rel (0) target = $region25
    $region24: #{tpu_custom_call.1} parent=1 // pred_region
      _
    $region25: #{tpu_custom_call.1} parent=1 // pred_fallthru
      _
    // Predicated region
    $region26: #{tpu_custom_call.1} parent=1 // pred_check
      _
    $region27: #{tpu_custom_call.1} parent=1 // pred_check_branch
      %26 = sbr.rel (0) target = $region29
    $region28: #{tpu_custom_call.1} parent=1 // pred_region
      _
    $region29: #{tpu_custom_call.1} parent=1 // pred_fallthru
      _
    %v28 = vld [vmem:[%s0] sm:$0xff]
    %v29 = vld [vmem:[%s0 + $0x8] sm:$0xff]
    %v30 = vld [vmem:[%s0 + $0x10] sm:$0xff]
    %v31 = vld [vmem:[%s0 + $0x18] sm:$0xff]
    %v32 = vld [vmem:[%s0 + $0x20] sm:$0xff]
    %v33 = vld [vmem:[%s0 + $0x28] sm:$0xff]
    %v34 = vld [vmem:[%s0 + $0x30] sm:$0xff]
    %v35 = vld [vmem:[%s0 + $0x38] sm:$0xff]
    %v36 = vld [vmem:[%s0 + $0x40] sm:$0xff]
    %v37 = vld [vmem:[%s0 + $0x48] sm:$0xff]
    %v38 = vld [vmem:[%s0 + $0x50] sm:$0xff]
    %v39 = vld [vmem:[%s0 + $0x58] sm:$0xff]
    %v40 = vld [vmem:[%s0 + $0x60] sm:$0xff]
    %v41 = vld [vmem:[%s0 + $0x68] sm:$0xff]
    %v42 = vld [vmem:[%s0 + $0x70] sm:$0xff]
    %v43 = vld [vmem:[%s0 + $0x78] sm:$0xff]
    %v44 = vld [vmem:[%s0 + $0x80] sm:$0xff]
    %v45 = vld [vmem:[%s0 + $0x88] sm:$0xff]
    %v46 = vld [vmem:[%s0 + $0x90] sm:$0xff]
    %v47 = vld [vmem:[%s0 + $0x98] sm:$0xff]
    %v48 = vld [vmem:[%s0 + $0xa0] sm:$0xff]
    %v49 = vld [vmem:[%s0 + $0xa8] sm:$0xff]
    %v50 = vld [vmem:[%s0 + $0xb0] sm:$0xff]
    %v51 = vld [vmem:[%s0 + $0xb8] sm:$0xff]
    %v52 = vld [vmem:[%s0 + $0xc0] sm:$0xff]
    %v53 = vld [vmem:[%s0 + $0xc8] sm:$0xff]
    %v54 = vld [vmem:[%s0 + $0xd0] sm:$0xff]
    %v55 = vld [vmem:[%s0 + $0xd8] sm:$0xff]
    %v56 = vld [vmem:[%s0 + $0xe0] sm:$0xff]
    %v57 = vld [vmem:[%s0 + $0xe8] sm:$0xff]
    %v58 = vld [vmem:[%s0 + $0xf0] sm:$0xff]
    %v59 = vld [vmem:[%s0 + $0xf8] sm:$0xff]
    %v60 = vld [vmem:[%s0 + $0x100] sm:$0xff]
    %v61 = vld [vmem:[%s0 + $0x108] sm:$0xff]
    %v62 = vld [vmem:[%s0 + $0x110] sm:$0xff]
    %v63 = vld [vmem:[%s0 + $0x118] sm:$0xff]
    %v64 = vld [vmem:[%s0 + $0x120] sm:$0xff]
    %v65 = vld [vmem:[%s0 + $0x128] sm:$0xff]
    %v66 = vld [vmem:[%s0 + $0x130] sm:$0xff]
    %v67 = vld [vmem:[%s0 + $0x138] sm:$0xff]
    %v68 = vld [vmem:[%s0 + $0x140] sm:$0xff]
    %v69 = vld [vmem:[%s0 + $0x148] sm:$0xff]
    %v70 = vld [vmem:[%s0 + $0x150] sm:$0xff]
    %v71 = vld [vmem:[%s0 + $0x158] sm:$0xff]
    %v72 = vld [vmem:[%s0 + $0x160] sm:$0xff]
    %v73 = vld [vmem:[%s0 + $0x168] sm:$0xff]
    %v74 = vld [vmem:[%s0 + $0x170] sm:$0xff]
    %v75 = vld [vmem:[%s0 + $0x178] sm:$0xff]
    %v76 = vld [vmem:[%s0 + $0x180] sm:$0xff]
    %v77 = vld [vmem:[%s0 + $0x188] sm:$0xff]
    %v78 = vld [vmem:[%s0 + $0x190] sm:$0xff]
    %v79 = vld [vmem:[%s0 + $0x198] sm:$0xff]
    %v80 = vld [vmem:[%s0 + $0x1a0] sm:$0xff]
    %v81 = vld [vmem:[%s0 + $0x1a8] sm:$0xff]
    %v82 = vld [vmem:[%s0 + $0x1b0] sm:$0xff]
    %v83 = vld [vmem:[%s0 + $0x1b8] sm:$0xff]
    %v84 = vld [vmem:[%s0 + $0x1c0] sm:$0xff]
    %v85 = vld [vmem:[%s0 + $0x1c8] sm:$0xff]
    %v86 = vld [vmem:[%s0 + $0x1d0] sm:$0xff]
    %v87 = vld [vmem:[%s0 + $0x1d8] sm:$0xff]
    %v88 = vld [vmem:[%s0 + $0x1e0] sm:$0xff]
    %v89 = vld [vmem:[%s0 + $0x1e8] sm:$0xff]
    %v90 = vld [vmem:[%s0 + $0x1f0] sm:$0xff]
    %v91 = vld [vmem:[%s0 + $0x1f8] sm:$0xff]
    %v92 = vmul.f32 %v28, %v28
    %v93 = vmul.f32 %v29, %v29
    %v94 = vmul.f32 %v30, %v30
    %v95 = vmul.f32 %v31, %v31
    %v96 = vmul.f32 %v32, %v32
    %v97 = vmul.f32 %v33, %v33
    %v98 = vmul.f32 %v34, %v34
    %v99 = vmul.f32 %v35, %v35
    %v100 = vmul.f32 %v36, %v36
    %v101 = vmul.f32 %v37, %v37
    %v102 = vmul.f32 %v38, %v38
    %v103 = vmul.f32 %v39, %v39
    %v104 = vmul.f32 %v40, %v40
    %v105 = vmul.f32 %v41, %v41
    %v106 = vmul.f32 %v42, %v42
    %v107 = vmul.f32 %v43, %v43
    %v108 = vmul.f32 %v44, %v44
    %v109 = vmul.f32 %v45, %v45
    %v110 = vmul.f32 %v46, %v46
    %v111 = vmul.f32 %v47, %v47
    %v112 = vmul.f32 %v48, %v48
    %v113 = vmul.f32 %v49, %v49
    %v114 = vmul.f32 %v50, %v50
    %v115 = vmul.f32 %v51, %v51
    %v116 = vmul.f32 %v52, %v52
    %v117 = vmul.f32 %v53, %v53
    %v118 = vmul.f32 %v54, %v54
    %v119 = vmul.f32 %v55, %v55
    %v120 = vmul.f32 %v56, %v56
    %v121 = vmul.f32 %v57, %v57
    %v122 = vmul.f32 %v58, %v58
    %v123 = vmul.f32 %v59, %v59
    %v124 = vmul.f32 %v60, %v60
    %v125 = vmul.f32 %v61, %v61
    %v126 = vmul.f32 %v62, %v62
    %v127 = vmul.f32 %v63, %v63
    %v128 = vmul.f32 %v64, %v64
    %v129 = vmul.f32 %v65, %v65
    %v130 = vmul.f32 %v66, %v66
    %v131 = vmul.f32 %v67, %v67
    %v132 = vmul.f32 %v68, %v68
    %v133 = vmul.f32 %v69, %v69
    %v134 = vmul.f32 %v70, %v70
    %v135 = vmul.f32 %v71, %v71
    %v136 = vmul.f32 %v72, %v72
    %v137 = vmul.f32 %v73, %v73
    %v138 = vmul.f32 %v74, %v74
    %v139 = vmul.f32 %v75, %v75
    %v140 = vmul.f32 %v76, %v76
    %v141 = vmul.f32 %v77, %v77
    %v142 = vmul.f32 %v78, %v78
    %v143 = vmul.f32 %v79, %v79
    %v144 = vmul.f32 %v80, %v80
    %v145 = vmul.f32 %v81, %v81
    %v146 = vmul.f32 %v82, %v82
    %v147 = vmul.f32 %v83, %v83
    %v148 = vmul.f32 %v84, %v84
    %v149 = vmul.f32 %v85, %v85
    %v150 = vmul.f32 %v86, %v86
    %v151 = vmul.f32 %v87, %v87
    %v152 = vmul.f32 %v88, %v88
    %v153 = vmul.f32 %v89, %v89
    %v154 = vmul.f32 %v90, %v90
    %v155 = vmul.f32 %v91, %v91
    %vm156 = vcmask 261120
    %v158 = vsel %vm156, 1.0, 0
    %v161 = vsel %vm156, %v92, 0
    %v164 = vsel %vm156, %v93, 0
    %v167 = vsel %vm156, %v94, 0
    %v170 = vsel %vm156, %v95, 0
    %v173 = vsel %vm156, %v96, 0
    %v176 = vsel %vm156, %v97, 0
    %v179 = vsel %vm156, %v98, 0
    %v182 = vsel %vm156, %v99, 0
    %v185 = vsel %vm156, %v100, 0
    %v188 = vsel %vm156, %v101, 0
    %v191 = vsel %vm156, %v102, 0
    %v194 = vsel %vm156, %v103, 0
    %v197 = vsel %vm156, %v104, 0
    %v200 = vsel %vm156, %v105, 0
    %v203 = vsel %vm156, %v106, 0
    %v206 = vsel %vm156, %v107, 0
    %v209 = vsel %vm156, %v108, 0
    %v212 = vsel %vm156, %v109, 0
    %v215 = vsel %vm156, %v110, 0
    %v218 = vsel %vm156, %v111, 0
    %v221 = vsel %vm156, %v112, 0
    %v224 = vsel %vm156, %v113, 0
    %v227 = vsel %vm156, %v114, 0
    %v230 = vsel %vm156, %v115, 0
    %v233 = vsel %vm156, %v116, 0
    %v236 = vsel %vm156, %v117, 0
    %v239 = vsel %vm156, %v118, 0
    %v242 = vsel %vm156, %v119, 0
    %v245 = vsel %vm156, %v120, 0
    %v248 = vsel %vm156, %v121, 0
    %v251 = vsel %vm156, %v122, 0
    %v254 = vsel %vm156, %v123, 0
    %v257 = vsel %vm156, %v124, 0
    %v260 = vsel %vm156, %v125, 0
    %v263 = vsel %vm156, %v126, 0
    %v266 = vsel %vm156, %v127, 0
    %v269 = vsel %vm156, %v128, 0
    %v272 = vsel %vm156, %v129, 0
    %v275 = vsel %vm156, %v130, 0
    %v278 = vsel %vm156, %v131, 0
    %v281 = vsel %vm156, %v132, 0
    %v284 = vsel %vm156, %v133, 0
    %v287 = vsel %vm156, %v134, 0
    %v290 = vsel %vm156, %v135, 0
    %v293 = vsel %vm156, %v136, 0
    %v296 = vsel %vm156, %v137, 0
    %v299 = vsel %vm156, %v138, 0
    %v302 = vsel %vm156, %v139, 0
    %v305 = vsel %vm156, %v140, 0
    %v308 = vsel %vm156, %v141, 0
    %v311 = vsel %vm156, %v142, 0
    %v314 = vsel %vm156, %v143, 0
    %v317 = vsel %vm156, %v144, 0
    %v320 = vsel %vm156, %v145, 0
    %v323 = vsel %vm156, %v146, 0
    %v326 = vsel %vm156, %v147, 0
    %v329 = vsel %vm156, %v148, 0
    %v332 = vsel %vm156, %v149, 0
    %v335 = vsel %vm156, %v150, 0
    %v338 = vsel %vm156, %v151, 0
    %v341 = vsel %vm156, %v152, 0
    %v344 = vsel %vm156, %v153, 0
    %v347 = vsel %vm156, %v154, 0
    %v350 = vsel %vm156, %v155, 0
    %352 = vmatprep.subr.mxu0 0.0
    %353 = vmatpush1.xpose.msra.mxu0 %v206
    %354 = vmatprep.subr.mxu0 0.0
    %355 = vmatpush1.xpose.msra.mxu0 %v203
    %356 = vmatprep.subr.mxu0 0.0
    %357 = vmatpush1.xpose.msra.mxu0 %v200
    %358 = vmatprep.subr.mxu0 0.0
    %359 = vmatpush1.xpose.msra.mxu0 %v197
    %360 = vmatprep.subr.mxu0 0.0
    %361 = vmatpush1.xpose.msra.mxu0 %v194
    %362 = vmatprep.subr.mxu0 0.0
    %363 = vmatpush1.xpose.msra.mxu0 %v191
    %364 = vmatprep.subr.mxu0 0.0
    %365 = vmatpush1.xpose.msra.mxu0 %v188
    %366 = vmatprep.subr.mxu0 0.0
    %367 = vmatpush1.xpose.msra.mxu0 %v185
    %368 = vmatprep.subr.mxu0 0.0
    %369 = vmatpush1.xpose.msra.mxu0 %v182
    %370 = vmatprep.subr.mxu0 0.0
    %371 = vmatpush1.xpose.msra.mxu0 %v179
    %372 = vmatprep.subr.mxu0 0.0
    %373 = vmatpush1.xpose.msra.mxu0 %v176
    %374 = vmatprep.subr.mxu0 0.0
    %375 = vmatpush1.xpose.msra.mxu0 %v173
    %376 = vmatprep.subr.mxu0 0.0
    %377 = vmatpush1.xpose.msra.mxu0 %v170
    %378 = vmatprep.subr.mxu0 0.0
    %379 = vmatpush1.xpose.msra.mxu0 %v167
    %380 = vmatprep.subr.mxu0 0.0
    %381 = vmatpush1.xpose.msra.mxu0 %v164
    %382 = vmatprep.subr.mxu0 0.0
    %383 = vmatpush1.xpose.msra.mxu0 %v161
    %384 = vmatprep.subr.mxu0 0.0
    %385 = vmatpush2.xpose.msra.mxu0 %v254
    %386 = vmatprep.subr.mxu0 0.0
    %387 = vmatpush2.xpose.msra.mxu0 %v251
    %388 = vmatprep.subr.mxu0 0.0
    %389 = vmatpush2.xpose.msra.mxu0 %v248
    %390 = vmatprep.subr.mxu0 0.0
    %391 = vmatpush2.xpose.msra.mxu0 %v245
    %392 = vmatprep.subr.mxu0 0.0
    %393 = vmatpush2.xpose.msra.mxu0 %v242
    %394 = vmatprep.subr.mxu0 0.0
    %395 = vmatpush2.xpose.msra.mxu0 %v239
    %396 = vmatprep.subr.mxu0 0.0
    %397 = vmatpush2.xpose.msra.mxu0 %v236
    %398 = vmatprep.subr.mxu0 0.0
    %399 = vmatpush2.xpose.msra.mxu0 %v233
    %400 = vmatprep.subr.mxu0 0.0
    %401 = vmatpush2.xpose.msra.mxu0 %v230
    %402 = vmatprep.subr.mxu0 0.0
    %403 = vmatpush2.xpose.msra.mxu0 %v227
    %404 = vmatprep.subr.mxu0 0.0
    %405 = vmatpush2.xpose.msra.mxu0 %v224
    %406 = vmatprep.subr.mxu0 0.0
    %407 = vmatpush2.xpose.msra.mxu0 %v221
    %408 = vmatprep.subr.mxu0 0.0
    %409 = vmatpush2.xpose.msra.mxu0 %v218
    %410 = vmatprep.subr.mxu0 0.0
    %411 = vmatpush2.xpose.msra.mxu0 %v215
    %412 = vmatprep.subr.mxu0 0.0
    %413 = vmatpush2.xpose.msra.mxu0 %v212
    %414 = vmatprep.subr.mxu0 0.0
    %415 = vmatpush2.xpose.msra.mxu0 %v209
    %416 = vmatprep.mubr.f32.mxu0 0.0
    %417 = vmatmul.mubr.f32.gmra.mxu0 %v158
    %v418 = vpop.f32.mrf.mxu0
    %v419 = vadd.f32 0.0, %v418
    %v420 = vpop.f32.mrf.mxu0
    %v421 = vadd.f32 0.0, %v420
    %422 = vdwg.mxu0
    %423 = vmatprep.subr.mxu0 0.0
    %424 = vmatpush1.xpose.msra.mxu0 %v302
    %425 = vmatprep.subr.mxu0 0.0
    %426 = vmatpush1.xpose.msra.mxu0 %v299
    %427 = vmatprep.subr.mxu0 0.0
    %428 = vmatpush1.xpose.msra.mxu0 %v296
    %429 = vmatprep.subr.mxu0 0.0
    %430 = vmatpush1.xpose.msra.mxu0 %v293
    %431 = vmatprep.subr.mxu0 0.0
    %432 = vmatpush1.xpose.msra.mxu0 %v290
    %433 = vmatprep.subr.mxu0 0.0
    %434 = vmatpush1.xpose.msra.mxu0 %v287
    %435 = vmatprep.subr.mxu0 0.0
    %436 = vmatpush1.xpose.msra.mxu0 %v284
    %437 = vmatprep.subr.mxu0 0.0
    %438 = vmatpush1.xpose.msra.mxu0 %v281
    %439 = vmatprep.subr.mxu0 0.0
    %440 = vmatpush1.xpose.msra.mxu0 %v278
    %441 = vmatprep.subr.mxu0 0.0
    %442 = vmatpush1.xpose.msra.mxu0 %v275
    %443 = vmatprep.subr.mxu0 0.0
    %444 = vmatpush1.xpose.msra.mxu0 %v272
    %445 = vmatprep.subr.mxu0 0.0
    %446 = vmatpush1.xpose.msra.mxu0 %v269
    %447 = vmatprep.subr.mxu0 0.0
    %448 = vmatpush1.xpose.msra.mxu0 %v266
    %449 = vmatprep.subr.mxu0 0.0
    %450 = vmatpush1.xpose.msra.mxu0 %v263
    %451 = vmatprep.subr.mxu0 0.0
    %452 = vmatpush1.xpose.msra.mxu0 %v260
    %453 = vmatprep.subr.mxu0 0.0
    %454 = vmatpush1.xpose.msra.mxu0 %v257
    %455 = vmatprep.subr.mxu0 0.0
    %456 = vmatpush2.xpose.msra.mxu0 %v350
    %457 = vmatprep.subr.mxu0 0.0
    %458 = vmatpush2.xpose.msra.mxu0 %v347
    %459 = vmatprep.subr.mxu0 0.0
    %460 = vmatpush2.xpose.msra.mxu0 %v344
    %461 = vmatprep.subr.mxu0 0.0
    %462 = vmatpush2.xpose.msra.mxu0 %v341
    %463 = vmatprep.subr.mxu0 0.0
    %464 = vmatpush2.xpose.msra.mxu0 %v338
    %465 = vmatprep.subr.mxu0 0.0
    %466 = vmatpush2.xpose.msra.mxu0 %v335
    %467 = vmatprep.subr.mxu0 0.0
    %468 = vmatpush2.xpose.msra.mxu0 %v332
    %469 = vmatprep.subr.mxu0 0.0
    %470 = vmatpush2.xpose.msra.mxu0 %v329
    %471 = vmatprep.subr.mxu0 0.0
    %472 = vmatpush2.xpose.msra.mxu0 %v326
    %473 = vmatprep.subr.mxu0 0.0
    %474 = vmatpush2.xpose.msra.mxu0 %v323
    %475 = vmatprep.subr.mxu0 0.0
    %476 = vmatpush2.xpose.msra.mxu0 %v320
    %477 = vmatprep.subr.mxu0 0.0
    %478 = vmatpush2.xpose.msra.mxu0 %v317
    %479 = vmatprep.subr.mxu0 0.0
    %480 = vmatpush2.xpose.msra.mxu0 %v314
    %481 = vmatprep.subr.mxu0 0.0
    %482 = vmatpush2.xpose.msra.mxu0 %v311
    %483 = vmatprep.subr.mxu0 0.0
    %484 = vmatpush2.xpose.msra.mxu0 %v308
    %485 = vmatprep.subr.mxu0 0.0
    %486 = vmatpush2.xpose.msra.mxu0 %v305
    %487 = vmatprep.mubr.f32.mxu0 0.0
    %488 = vmatmul.mubr.f32.gmra.mxu0 %v158
    %v489 = vpop.f32.mrf.mxu0
    %v490 = vadd.f32 0.0, %v489
    %v491 = vpop.f32.mrf.mxu0
    %v492 = vadd.f32 0.0, %v491
    %493 = vdwg.mxu0
    %v494 = vmax.f32 %v419, 1e-20
    %v495 = vmax.f32 %v421, 1e-20
    %v496 = vmax.f32 %v490, 1e-20
    %v497 = vmax.f32 %v492, 1e-20
    %v498 = vrsqrt.pop %v494
    %v499 = vrsqrt.pop %v495
    %v500 = vrsqrt.pop %v496
    %v501 = vrsqrt.pop %v497
    %v502 = vld [vmem:[%s1] sm:$0xf]
    %v503 = vld [vmem:[%s1 + $0x4] sm:$0xf]
    %v504 = vld [vmem:[%s1 + $0x8] sm:$0xf]
    %v505 = vld [vmem:[%s1 + $0xc] sm:$0xf]
    %v506 = vld [vmem:[%s1 + $0x10] sm:$0xf]
    %v507 = vld [vmem:[%s1 + $0x14] sm:$0xf]
    %v508 = vpack.c.bf16 %v29, %v28
    %v509 = vpack.c.bf16 %v31, %v30
    %v510 = vpack.c.bf16 %v33, %v32
    %v511 = vpack.c.bf16 %v35, %v34
    %v512 = vpack.c.bf16 %v37, %v36
    %v513 = vpack.c.bf16 %v39, %v38
    %v514 = vpack.c.bf16 %v41, %v40
    %v515 = vpack.c.bf16 %v43, %v42
    %v516 = vpack.c.bf16 %v45, %v44
    %v517 = vpack.c.bf16 %v47, %v46
    %v518 = vpack.c.bf16 %v49, %v48
    %v519 = vpack.c.bf16 %v51, %v50
    %v520 = vpack.c.bf16 %v53, %v52
    %v521 = vpack.c.bf16 %v55, %v54
    %v522 = vpack.c.bf16 %v57, %v56
    %v523 = vpack.c.bf16 %v59, %v58
    %v524 = vpack.c.bf16 %v61, %v60
    %v525 = vpack.c.bf16 %v63, %v62
    %v526 = vpack.c.bf16 %v65, %v64
    %v527 = vpack.c.bf16 %v67, %v66
    %v528 = vpack.c.bf16 %v69, %v68
    %v529 = vpack.c.bf16 %v71, %v70
    %v530 = vpack.c.bf16 %v73, %v72
    %v531 = vpack.c.bf16 %v75, %v74
    %v532 = vpack.c.bf16 %v77, %v76
    %v533 = vpack.c.bf16 %v79, %v78
    %v534 = vpack.c.bf16 %v81, %v80
    %v535 = vpack.c.bf16 %v83, %v82
    %v536 = vpack.c.bf16 %v85, %v84
    %v537 = vpack.c.bf16 %v87, %v86
    %v538 = vpack.c.bf16 %v89, %v88
    %v539 = vpack.c.bf16 %v91, %v90
    %v546 = vunpack.c.l.b16 %v502
    %v547 = vunpack.c.l.b16 %v503
    %v548 = vunpack.c.l.b16 %v504
    %v549 = vunpack.c.l.b16 %v505
    %v550 = vunpack.c.l.b16 %v506
    %v551 = vunpack.c.l.b16 %v507
    %v552 = vpack.c.b16 %v547, %v546
    %v553 = vpack.c.b16 %v549, %v548
    %v554 = vpack.c.b16 %v551, %v550
    %v556 = vsel %vm156, %v552, 0
    %v559 = vsel %vm156, %v553, 0
    %v562 = vsel %vm156, %v554, 0
    %v565 = vsel %vm156, %v508, 0
    %v568 = vsel %vm156, %v509, 0
    %v571 = vsel %vm156, %v510, 0
    %v574 = vsel %vm156, %v511, 0
    %v577 = vsel %vm156, %v512, 0
    %v580 = vsel %vm156, %v513, 0
    %v583 = vsel %vm156, %v514, 0
    %v586 = vsel %vm156, %v515, 0
    %v589 = vsel %vm156, %v516, 0
    %v592 = vsel %vm156, %v517, 0
    %v595 = vsel %vm156, %v518, 0
    %v598 = vsel %vm156, %v519, 0
    %v601 = vsel %vm156, %v520, 0
    %v604 = vsel %vm156, %v521, 0
    %v607 = vsel %vm156, %v522, 0
    %v610 = vsel %vm156, %v523, 0
    %v613 = vsel %vm156, %v524, 0
    %v616 = vsel %vm156, %v525, 0
    %v619 = vsel %vm156, %v526, 0
    %v622 = vsel %vm156, %v527, 0
    %v625 = vsel %vm156, %v528, 0
    %v628 = vsel %vm156, %v529, 0
    %v631 = vsel %vm156, %v530, 0
    %v634 = vsel %vm156, %v531, 0
    %v637 = vsel %vm156, %v532, 0
    %v640 = vsel %vm156, %v533, 0
    %v643 = vsel %vm156, %v534, 0
    %v646 = vsel %vm156, %v535, 0
    %v649 = vsel %vm156, %v536, 0
    %v652 = vsel %vm156, %v537, 0
    %v655 = vsel %vm156, %v538, 0
    %v658 = vsel %vm156, %v539, 0
    %660 = vmatprep.subr.bf16.mxu0 0
    %661 = vmatpush1.bf16.xpose.msra.mxu0 %v586
    %662 = vmatprep.subr.bf16.mxu0 0
    %663 = vmatpush1.bf16.xpose.msra.mxu0 %v583
    %664 = vmatprep.subr.bf16.mxu0 0
    %665 = vmatpush1.bf16.xpose.msra.mxu0 %v580
    %666 = vmatprep.subr.bf16.mxu0 0
    %667 = vmatpush1.bf16.xpose.msra.mxu0 %v577
    %668 = vmatprep.subr.bf16.mxu0 0
    %669 = vmatpush1.bf16.xpose.msra.mxu0 %v574
    %670 = vmatprep.subr.bf16.mxu0 0
    %671 = vmatpush1.bf16.xpose.msra.mxu0 %v571
    %672 = vmatprep.subr.bf16.mxu0 0
    %673 = vmatpush1.bf16.xpose.msra.mxu0 %v568
    %674 = vmatprep.subr.bf16.mxu0 0
    %675 = vmatpush1.bf16.xpose.msra.mxu0 %v565
    %676 = vmatprep.subr.bf16.mxu0 0
    %677 = vmatpush2.bf16.xpose.msra.mxu0 %v610
    %678 = vmatprep.subr.bf16.mxu0 0
    %679 = vmatpush2.bf16.xpose.msra.mxu0 %v607
    %680 = vmatprep.subr.bf16.mxu0 0
    %681 = vmatpush2.bf16.xpose.msra.mxu0 %v604
    %682 = vmatprep.subr.bf16.mxu0 0
    %683 = vmatpush2.bf16.xpose.msra.mxu0 %v601
    %684 = vmatprep.subr.bf16.mxu0 0
    %685 = vmatpush2.bf16.xpose.msra.mxu0 %v598
    %686 = vmatprep.subr.bf16.mxu0 0
    %687 = vmatpush2.bf16.xpose.msra.mxu0 %v595
    %688 = vmatprep.subr.bf16.mxu0 0
    %689 = vmatpush2.bf16.xpose.msra.mxu0 %v592
    %690 = vmatprep.subr.bf16.mxu0 0
    %691 = vmatpush2.bf16.xpose.msra.mxu0 %v589
    %692 = vmatprep.mubr.bf16.mxu0 0
    %693 = vmatmul.mubr.bf16.gmra.mxu0 %v556
    %v694 = vpop.f32.mrf.mxu0
    %v695 = vadd.f32 0.0, %v694
    %v696 = vpop.f32.mrf.mxu0
    %v697 = vadd.f32 0.0, %v696
    %v698 = vpop.f32.mrf.mxu0
    %v699 = vadd.f32 0.0, %v698
    %v700 = vpop.f32.mrf.mxu0
    %v701 = vadd.f32 0.0, %v700
    %702 = vmatprep.mubr.bf16.mxu0 0
    %703 = vmatmul.mubr.bf16.gmra.mxu0 %v559
    %v704 = vpop.f32.mrf.mxu0
    %v705 = vadd.f32 0.0, %v704
    %v706 = vpop.f32.mrf.mxu0
    %v707 = vadd.f32 0.0, %v706
    %v708 = vpop.f32.mrf.mxu0
    %v709 = vadd.f32 0.0, %v708
    %v710 = vpop.f32.mrf.mxu0
    %v711 = vadd.f32 0.0, %v710
    %712 = vmatprep.mubr.bf16.mxu0 0
    %713 = vmatmul.mubr.bf16.gmra.mxu0 %v562
    %v714 = vpop.f32.mrf.mxu0
    %v715 = vadd.f32 0.0, %v714
    %v716 = vpop.f32.mrf.mxu0
    %v717 = vadd.f32 0.0, %v716
    %v718 = vpop.f32.mrf.mxu0
    %v719 = vadd.f32 0.0, %v718
    %v720 = vpop.f32.mrf.mxu0
    %v721 = vadd.f32 0.0, %v720
    %722 = vdwg.mxu0
    %723 = vmatprep.subr.bf16.mxu0 0
    %724 = vmatpush1.bf16.xpose.msra.mxu0 %v634
    %725 = vmatprep.subr.bf16.mxu0 0
    %726 = vmatpush1.bf16.xpose.msra.mxu0 %v631
    %727 = vmatprep.subr.bf16.mxu0 0
    %728 = vmatpush1.bf16.xpose.msra.mxu0 %v628
    %729 = vmatprep.subr.bf16.mxu0 0
    %730 = vmatpush1.bf16.xpose.msra.mxu0 %v625
    %731 = vmatprep.subr.bf16.mxu0 0
    %732 = vmatpush1.bf16.xpose.msra.mxu0 %v622
    %733 = vmatprep.subr.bf16.mxu0 0
    %734 = vmatpush1.bf16.xpose.msra.mxu0 %v619
    %735 = vmatprep.subr.bf16.mxu0 0
    %736 = vmatpush1.bf16.xpose.msra.mxu0 %v616
    %737 = vmatprep.subr.bf16.mxu0 0
    %738 = vmatpush1.bf16.xpose.msra.mxu0 %v613
    %739 = vmatprep.subr.bf16.mxu0 0
    %740 = vmatpush2.bf16.xpose.msra.mxu0 %v658
    %741 = vmatprep.subr.bf16.mxu0 0
    %742 = vmatpush2.bf16.xpose.msra.mxu0 %v655
    %743 = vmatprep.subr.bf16.mxu0 0
    %744 = vmatpush2.bf16.xpose.msra.mxu0 %v652
    %745 = vmatprep.subr.bf16.mxu0 0
    %746 = vmatpush2.bf16.xpose.msra.mxu0 %v649
    %747 = vmatprep.subr.bf16.mxu0 0
    %748 = vmatpush2.bf16.xpose.msra.mxu0 %v646
    %749 = vmatprep.subr.bf16.mxu0 0
    %750 = vmatpush2.bf16.xpose.msra.mxu0 %v643
    %751 = vmatprep.subr.bf16.mxu0 0
    %752 = vmatpush2.bf16.xpose.msra.mxu0 %v640
    %753 = vmatprep.subr.bf16.mxu0 0
    %754 = vmatpush2.bf16.xpose.msra.mxu0 %v637
    %755 = vmatprep.mubr.bf16.mxu0 0
    %756 = vmatmul.mubr.bf16.gmra.mxu0 %v556
    %v757 = vpop.f32.mrf.mxu0
    %v758 = vadd.f32 0.0, %v757
    %v759 = vpop.f32.mrf.mxu0
    %v760 = vadd.f32 0.0, %v759
    %v761 = vpop.f32.mrf.mxu0
    %v762 = vadd.f32 0.0, %v761
    %v763 = vpop.f32.mrf.mxu0
    %v764 = vadd.f32 0.0, %v763
    %765 = vmatprep.mubr.bf16.mxu0 0
    %766 = vmatmul.mubr.bf16.gmra.mxu0 %v559
    %v767 = vpop.f32.mrf.mxu0
    %v768 = vadd.f32 0.0, %v767
    %v769 = vpop.f32.mrf.mxu0
    %v770 = vadd.f32 0.0, %v769
    %v771 = vpop.f32.mrf.mxu0
    %v772 = vadd.f32 0.0, %v771
    %v773 = vpop.f32.mrf.mxu0
    %v774 = vadd.f32 0.0, %v773
    %775 = vmatprep.mubr.bf16.mxu0 0
    %776 = vmatmul.mubr.bf16.gmra.mxu0 %v562
    %v777 = vpop.f32.mrf.mxu0
    %v778 = vadd.f32 0.0, %v777
    %v779 = vpop.f32.mrf.mxu0
    %v780 = vadd.f32 0.0, %v779
    %v781 = vpop.f32.mrf.mxu0
    %v782 = vadd.f32 0.0, %v781
    %v783 = vpop.f32.mrf.mxu0
    %v784 = vadd.f32 0.0, %v783
    %785 = vdwg.mxu0
    %v786 = vlaneseq
    %v787 = vshrl.u32 %v786, 7
    %v788 = vsub.s32 0, %v787
    %v789 = vrot.slane %v498, %v788
    %v790 = vlaneseq
    %v791 = vshrl.u32 %v790, 7
    %v792 = vsub.s32 0, %v791
    %v793 = vrot.slane %v499, %v792
    %v794 = vlaneseq
    %v795 = vshrl.u32 %v794, 7
    %v796 = vsub.s32 0, %v795
    %v797 = vrot.slane %v500, %v796
    %v798 = vlaneseq
    %v799 = vshrl.u32 %v798, 7
    %v800 = vsub.s32 0, %v799
    %v801 = vrot.slane %v501, %v800
    %v802 = vmul.f32 %v695, %v789
    %v803 = vmul.f32 %v697, %v793
    %v804 = vmul.f32 %v758, %v797
    %v805 = vmul.f32 %v760, %v801
    %v806 = vmul.f32 %v699, %v789
    %v807 = vmul.f32 %v701, %v793
    %v808 = vmul.f32 %v762, %v797
    %v809 = vmul.f32 %v764, %v801
    %v810 = vmul.f32 %v705, %v789
    %v811 = vmul.f32 %v707, %v793
    %v812 = vmul.f32 %v768, %v797
    %v813 = vmul.f32 %v770, %v801
    %v814 = vmul.f32 %v709, %v789
    %v815 = vmul.f32 %v711, %v793
    %v816 = vmul.f32 %v772, %v797
    %v817 = vmul.f32 %v774, %v801
    %v818 = vmul.f32 %v715, %v789
    %v819 = vmul.f32 %v717, %v793
    %v820 = vmul.f32 %v778, %v797
    %v821 = vmul.f32 %v780, %v801
    %v822 = vmul.f32 %v719, %v789
    %v823 = vmul.f32 %v721, %v793
    %v824 = vmul.f32 %v782, %v797
    %v825 = vmul.f32 %v784, %v801
    %v826 = vld [vmem:[%s2] sm:$0xff]
    %v827 = vld [vmem:[%s2 + $0x8] sm:$0xff]
    %v828 = vld [vmem:[%s2 + $0x10] sm:$0xff]
    %v829 = vld [vmem:[%s2 + $0x18] sm:$0xff]
    %v830 = vld [vmem:[%s2 + $0x20] sm:$0xff]
    %v831 = vld [vmem:[%s2 + $0x28] sm:$0xff]
    %833 = vset.pattern.permute.xlu0 0
    %834 = vperm.xlu0 %833, %v826
    %v835 = vpop.permute.xlu0 %834
    %838 = vset.pattern.permute.xlu0 0
    %839 = vperm.xlu0 %838, %v827
    %v840 = vpop.permute.xlu0 %839
    %843 = vset.pattern.permute.xlu0 0
    %844 = vperm.xlu0 %843, %v828
    %v845 = vpop.permute.xlu0 %844
    %848 = vset.pattern.permute.xlu0 0
    %849 = vperm.xlu0 %848, %v829
    %v850 = vpop.permute.xlu0 %849
    %853 = vset.pattern.permute.xlu0 0
    %854 = vperm.xlu0 %853, %v830
    %v855 = vpop.permute.xlu0 %854
    %858 = vset.pattern.permute.xlu0 0
    %859 = vperm.xlu0 %858, %v831
    %v860 = vpop.permute.xlu0 %859
    %v862 = vadd.f32 %v802, %v835
    %v863 = vadd.f32 %v803, %v835
    %v864 = vadd.f32 %v804, %v835
    %v865 = vadd.f32 %v805, %v835
    %v866 = vadd.f32 %v806, %v840
    %v867 = vadd.f32 %v807, %v840
    %v868 = vadd.f32 %v808, %v840
    %v869 = vadd.f32 %v809, %v840
    %v870 = vadd.f32 %v810, %v845
    %v871 = vadd.f32 %v811, %v845
    %v872 = vadd.f32 %v812, %v845
    %v873 = vadd.f32 %v813, %v845
    %v874 = vadd.f32 %v814, %v850
    %v875 = vadd.f32 %v815, %v850
    %v876 = vadd.f32 %v816, %v850
    %v877 = vadd.f32 %v817, %v850
    %v878 = vadd.f32 %v818, %v855
    %v879 = vadd.f32 %v819, %v855
    %v880 = vadd.f32 %v820, %v855
    %v881 = vadd.f32 %v821, %v855
    %v882 = vadd.f32 %v822, %v860
    %v883 = vadd.f32 %v823, %v860
    %v884 = vadd.f32 %v824, %v860
    %v885 = vadd.f32 %v825, %v860
    %v886 = vld [vmem:[%s3] sm:$0xff]
    %v887 = vld [vmem:[%s3 + $0x8] sm:$0xff]
    %v888 = vld [vmem:[%s3 + $0x10] sm:$0xff]
    %v889 = vld [vmem:[%s3 + $0x18] sm:$0xff]
    %v890 = vld [vmem:[%s3 + $0x20] sm:$0xff]
    %v891 = vld [vmem:[%s3 + $0x28] sm:$0xff]
    %893 = vset.pattern.permute.xlu0 0
    %894 = vperm.xlu0 %893, %v886
    %v895 = vpop.permute.xlu0 %894
    %898 = vset.pattern.permute.xlu0 0
    %899 = vperm.xlu0 %898, %v887
    %v900 = vpop.permute.xlu0 %899
    %903 = vset.pattern.permute.xlu0 0
    %904 = vperm.xlu0 %903, %v888
    %v905 = vpop.permute.xlu0 %904
    %908 = vset.pattern.permute.xlu0 0
    %909 = vperm.xlu0 %908, %v889
    %v910 = vpop.permute.xlu0 %909
    %913 = vset.pattern.permute.xlu0 0
    %914 = vperm.xlu0 %913, %v890
    %v915 = vpop.permute.xlu0 %914
    %918 = vset.pattern.permute.xlu0 0
    %919 = vperm.xlu0 %918, %v891
    %v920 = vpop.permute.xlu0 %919
    %v922 = vmax.f32 %v862, %v895
    %v923 = vmax.f32 %v863, %v895
    %v924 = vmax.f32 %v864, %v895
    %v925 = vmax.f32 %v865, %v895
    %v926 = vmax.f32 %v866, %v900
    %v927 = vmax.f32 %v867, %v900
    %v928 = vmax.f32 %v868, %v900
    %v929 = vmax.f32 %v869, %v900
    %v930 = vmax.f32 %v870, %v905
    %v931 = vmax.f32 %v871, %v905
    %v932 = vmax.f32 %v872, %v905
    %v933 = vmax.f32 %v873, %v905
    %v934 = vmax.f32 %v874, %v910
    %v935 = vmax.f32 %v875, %v910
    %v936 = vmax.f32 %v876, %v910
    %v937 = vmax.f32 %v877, %v910
    %v938 = vmax.f32 %v878, %v915
    %v939 = vmax.f32 %v879, %v915
    %v940 = vmax.f32 %v880, %v915
    %v941 = vmax.f32 %v881, %v915
    %v942 = vmax.f32 %v882, %v920
    %v943 = vmax.f32 %v883, %v920
    %v944 = vmax.f32 %v884, %v920
    %v945 = vmax.f32 %v885, %v920
    %v946 = vld [vmem:[%s4] sm:$0xf]
    %v947 = vld [vmem:[%s4 + $0x4] sm:$0xf]
    %v948 = vpack.c.bf16 %v926, %v922
    %v949 = vpack.c.bf16 %v927, %v923
    %v950 = vpack.c.bf16 %v928, %v924
    %v951 = vpack.c.bf16 %v929, %v925
    %v952 = vpack.c.bf16 %v934, %v930
    %v953 = vpack.c.bf16 %v935, %v931
    %v954 = vpack.c.bf16 %v936, %v932
    %v955 = vpack.c.bf16 %v937, %v933
    %v956 = vpack.c.bf16 %v942, %v938
    %v957 = vpack.c.bf16 %v943, %v939
    %v958 = vpack.c.bf16 %v944, %v940
    %v959 = vpack.c.bf16 %v945, %v941
    %v960 = vld [vmem:[%s5] sm:$0xff]
    %v961 = vld [vmem:[%s5 + $0x8] sm:$0xff]
    %963 = vset.pattern.permute.xlu0 0
    %964 = vperm.xlu0 %963, %v960
    %v965 = vpop.permute.xlu0 %964
    %968 = vset.pattern.permute.xlu0 0
    %969 = vperm.xlu0 %968, %v961
    %v970 = vpop.permute.xlu0 %969
    %v974 = vunpack.c.l.b16 %v946
    %v975 = vunpack.c.l.b16 %v947
    %v976 = vpack.c.b16 %v975, %v974
    %vm977 = vcmask 392192
    %v979 = vsel %vm977, %v976, 0
    %981 = vmatprep.subr.bf16.mxu0 0
    %982 = vmatpush1.bf16.msra.mxu0 0
    %983 = vmatprep.subr.bf16.mxu0 0
    %984 = vmatpush1.bf16.msra.mxu0 0
    %985 = vmatprep.subr.bf16.mxu0 0
    %986 = vmatpush1.bf16.msra.mxu0 0
    %987 = vmatprep.subr.bf16.mxu0 0
    %988 = vmatpush1.bf16.msra.mxu0 0
    %989 = vmatprep.subr.bf16.mxu0 0
    %990 = vmatpush1.bf16.msra.mxu0 0
    %991 = vmatprep.subr.bf16.mxu0 %v957
    %992 = vmatpush1.bf16.msra.mxu0 %v956
    %993 = vmatprep.subr.bf16.mxu0 %v953
    %994 = vmatpush1.bf16.msra.mxu0 %v952
    %995 = vmatprep.subr.bf16.mxu0 %v949
    %996 = vmatpush1.bf16.msra.mxu0 %v948
    %997 = vmatprep.subr.bf16.mxu0 0
    %998 = vmatpush2.bf16.msra.mxu0 0
    %999 = vmatprep.subr.bf16.mxu0 0
    %1000 = vmatpush2.bf16.msra.mxu0 0
    %1001 = vmatprep.subr.bf16.mxu0 0
    %1002 = vmatpush2.bf16.msra.mxu0 0
    %1003 = vmatprep.subr.bf16.mxu0 0
    %1004 = vmatpush2.bf16.msra.mxu0 0
    %1005 = vmatprep.subr.bf16.mxu0 0
    %1006 = vmatpush2.bf16.msra.mxu0 0
    %1007 = vmatprep.subr.bf16.mxu0 0
    %1008 = vmatpush2.bf16.msra.mxu0 0
    %1009 = vmatprep.subr.bf16.mxu0 0
    %1010 = vmatpush2.bf16.msra.mxu0 0
    %1011 = vmatprep.subr.bf16.mxu0 0
    %1012 = vmatpush2.bf16.msra.mxu0 0
    %1013 = vmatprep.mubr.bf16.mxu0 0
    %1014 = vmatmul.mubr.bf16.gmra.mxu0 %v979
    %v1015 = vpop.f32.mrf.mxu0
    %v1016 = vadd.f32 %v965, %v1015
    %v1017 = vpop.f32.mrf.mxu0
    %v1018 = vadd.f32 %v965, %v1017
    %v1019 = vpop.f32.mrf.mxu0
    %v1020 = vadd.f32 %v970, %v1019
    %v1021 = vpop.f32.mrf.mxu0
    %v1022 = vadd.f32 %v970, %v1021
    %1023 = vdwg.mxu0
    %1024 = vmatprep.subr.bf16.mxu0 0
    %1025 = vmatpush1.bf16.msra.mxu0 0
    %1026 = vmatprep.subr.bf16.mxu0 0
    %1027 = vmatpush1.bf16.msra.mxu0 0
    %1028 = vmatprep.subr.bf16.mxu0 0
    %1029 = vmatpush1.bf16.msra.mxu0 0
    %1030 = vmatprep.subr.bf16.mxu0 0
    %1031 = vmatpush1.bf16.msra.mxu0 0
    %1032 = vmatprep.subr.bf16.mxu0 0
    %1033 = vmatpush1.bf16.msra.mxu0 0
    %1034 = vmatprep.subr.bf16.mxu0 %v959
    %1035 = vmatpush1.bf16.msra.mxu0 %v958
    %1036 = vmatprep.subr.bf16.mxu0 %v955
    %1037 = vmatpush1.bf16.msra.mxu0 %v954
    %1038 = vmatprep.subr.bf16.mxu0 %v951
    %1039 = vmatpush1.bf16.msra.mxu0 %v950
    %1040 = vmatprep.subr.bf16.mxu0 0
    %1041 = vmatpush2.bf16.msra.mxu0 0
    %1042 = vmatprep.subr.bf16.mxu0 0
    %1043 = vmatpush2.bf16.msra.mxu0 0
    %1044 = vmatprep.subr.bf16.mxu0 0
    %1045 = vmatpush2.bf16.msra.mxu0 0
    %1046 = vmatprep.subr.bf16.mxu0 0
    %1047 = vmatpush2.bf16.msra.mxu0 0
    %1048 = vmatprep.subr.bf16.mxu0 0
    %1049 = vmatpush2.bf16.msra.mxu0 0
    %1050 = vmatprep.subr.bf16.mxu0 0
    %1051 = vmatpush2.bf16.msra.mxu0 0
    %1052 = vmatprep.subr.bf16.mxu0 0
    %1053 = vmatpush2.bf16.msra.mxu0 0
    %1054 = vmatprep.subr.bf16.mxu0 0
    %1055 = vmatpush2.bf16.msra.mxu0 0
    %1056 = vmatprep.mubr.bf16.mxu0 0
    %1057 = vmatmul.mubr.bf16.gmra.mxu0 %v979
    %v1058 = vpop.f32.mrf.mxu0
    %v1059 = vadd.f32 %v965, %v1058
    %v1060 = vpop.f32.mrf.mxu0
    %v1061 = vadd.f32 %v965, %v1060
    %v1062 = vpop.f32.mrf.mxu0
    %v1063 = vadd.f32 %v970, %v1062
    %v1064 = vpop.f32.mrf.mxu0
    %v1065 = vadd.f32 %v970, %v1064
    %1066 = vdwg.mxu0
    %v1067 = vmax.f32 %v1016, %v1020
    %v1068 = vrot.slane %v1067, 4
    %v1069 = vmax.f32 %v1067, %v1068
    %v1070 = vrot.slane %v1069, 2
    %v1071 = vmax.f32 %v1069, %v1070
    %v1072 = vrot.slane %v1071, 1
    %v1073 = vmax.f32 %v1071, %v1072
    %v1074 = vmax.f32 %v1018, %v1022
    %v1075 = vrot.slane %v1074, 4
    %v1076 = vmax.f32 %v1074, %v1075
    %v1077 = vrot.slane %v1076, 2
    %v1078 = vmax.f32 %v1076, %v1077
    %v1079 = vrot.slane %v1078, 1
    %v1080 = vmax.f32 %v1078, %v1079
    %v1081 = vmax.f32 %v1059, %v1063
    %v1082 = vrot.slane %v1081, 4
    %v1083 = vmax.f32 %v1081, %v1082
    %v1084 = vrot.slane %v1083, 2
    %v1085 = vmax.f32 %v1083, %v1084
    %v1086 = vrot.slane %v1085, 1
    %v1087 = vmax.f32 %v1085, %v1086
    %v1088 = vmax.f32 %v1061, %v1065
    %v1089 = vrot.slane %v1088, 4
    %v1090 = vmax.f32 %v1088, %v1089
    %v1091 = vrot.slane %v1090, 2
    %v1092 = vmax.f32 %v1090, %v1091
    %v1093 = vrot.slane %v1092, 1
    %v1094 = vmax.f32 %v1092, %v1093
    %v1095 = vlaneseq
    %v1096 = vshrl.u32 %v1095, 7
    %v1097 = vadd.s32 %v1096, 8
    %vm1098 = vcmp.eq.f32.partialorder %v1016, %v1073
    %vm1099 = vcmp.eq.f32.partialorder %v1018, %v1080
    %vm1100 = vcmp.eq.f32.partialorder %v1059, %v1087
    %vm1101 = vcmp.eq.f32.partialorder %v1061, %v1094
    %vm1102 = vcmp.eq.f32.partialorder %v1020, %v1073
    %vm1103 = vcmp.eq.f32.partialorder %v1022, %v1080
    %vm1104 = vcmp.eq.f32.partialorder %v1063, %v1087
    %vm1105 = vcmp.eq.f32.partialorder %v1065, %v1094
    %v1106 = vsel %vm1098, %v1096, 16
    %v1107 = vsel %vm1099, %v1096, 16
    %v1108 = vsel %vm1100, %v1096, 16
    %v1109 = vsel %vm1101, %v1096, 16
    %v1110 = vsel %vm1102, %v1097, 16
    %v1111 = vsel %vm1103, %v1097, 16
    %v1112 = vsel %vm1104, %v1097, 16
    %v1113 = vsel %vm1105, %v1097, 16
    %vm1114 = vcmp.lt.s32.totalorder %v1106, %v1110
    %v1115 = vsel %vm1114, %v1106, %v1110
    %v1116 = vrot.slane %v1115, 4
    %vm1117 = vcmp.lt.s32.totalorder %v1115, %v1116
    %v1118 = vsel %vm1117, %v1115, %v1116
    %v1119 = vrot.slane %v1118, 2
    %vm1120 = vcmp.lt.s32.totalorder %v1118, %v1119
    %v1121 = vsel %vm1120, %v1118, %v1119
    %v1122 = vrot.slane %v1121, 1
    %vm1123 = vcmp.lt.s32.totalorder %v1121, %v1122
    %v1124 = vsel %vm1123, %v1121, %v1122
    %vm1125 = vcmp.lt.s32.totalorder %v1107, %v1111
    %v1126 = vsel %vm1125, %v1107, %v1111
    %v1127 = vrot.slane %v1126, 4
    %vm1128 = vcmp.lt.s32.totalorder %v1126, %v1127
    %v1129 = vsel %vm1128, %v1126, %v1127
    %v1130 = vrot.slane %v1129, 2
    %vm1131 = vcmp.lt.s32.totalorder %v1129, %v1130
    %v1132 = vsel %vm1131, %v1129, %v1130
    %v1133 = vrot.slane %v1132, 1
    %vm1134 = vcmp.lt.s32.totalorder %v1132, %v1133
    %v1135 = vsel %vm1134, %v1132, %v1133
    %vm1136 = vcmp.lt.s32.totalorder %v1108, %v1112
    %v1137 = vsel %vm1136, %v1108, %v1112
    %v1138 = vrot.slane %v1137, 4
    %vm1139 = vcmp.lt.s32.totalorder %v1137, %v1138
    %v1140 = vsel %vm1139, %v1137, %v1138
    %v1141 = vrot.slane %v1140, 2
    %vm1142 = vcmp.lt.s32.totalorder %v1140, %v1141
    %v1143 = vsel %vm1142, %v1140, %v1141
    %v1144 = vrot.slane %v1143, 1
    %vm1145 = vcmp.lt.s32.totalorder %v1143, %v1144
    %v1146 = vsel %vm1145, %v1143, %v1144
    %vm1147 = vcmp.lt.s32.totalorder %v1109, %v1113
    %v1148 = vsel %vm1147, %v1109, %v1113
    %v1149 = vrot.slane %v1148, 4
    %vm1150 = vcmp.lt.s32.totalorder %v1148, %v1149
    %v1151 = vsel %vm1150, %v1148, %v1149
    %v1152 = vrot.slane %v1151, 2
    %vm1153 = vcmp.lt.s32.totalorder %v1151, %v1152
    %v1154 = vsel %vm1153, %v1151, %v1152
    %v1155 = vrot.slane %v1154, 1
    %vm1156 = vcmp.lt.s32.totalorder %v1154, %v1155
    %v1157 = vsel %vm1156, %v1154, %v1155
    %vm1158 = vcmp.eq.s32.totalorder %v1096, %v1124
    %vm1159 = vcmp.eq.s32.totalorder %v1096, %v1135
    %vm1160 = vcmp.eq.s32.totalorder %v1096, %v1146
    %vm1161 = vcmp.eq.s32.totalorder %v1096, %v1157
    %vm1162 = vcmp.eq.s32.totalorder %v1097, %v1124
    %vm1163 = vcmp.eq.s32.totalorder %v1097, %v1135
    %vm1164 = vcmp.eq.s32.totalorder %v1097, %v1146
    %vm1165 = vcmp.eq.s32.totalorder %v1097, %v1157
    %v1166 = vld [vmem:[%s6] sm:$0xff]
    %v1167 = vld [vmem:[%s6 + $0x8] sm:$0xff]
    %1168 = vset.pattern.permute.xlu0 0
    %1169 = vperm.xlu0 %1168, %v1166
    %v1170 = vpop.permute.xlu0 %1169
    %1171 = vset.pattern.permute.xlu0 0
    %1172 = vperm.xlu0 %1171, %v1167
    %v1173 = vpop.permute.xlu0 %1172
    %v1174 = vsel %vm1158, %v1170, 0
    %v1175 = vsel %vm1159, %v1170, 0
    %v1176 = vsel %vm1160, %v1170, 0
    %v1177 = vsel %vm1161, %v1170, 0
    %v1178 = vsel %vm1162, %v1173, 0
    %v1179 = vsel %vm1163, %v1173, 0
    %v1180 = vsel %vm1164, %v1173, 0
    %v1181 = vsel %vm1165, %v1173, 0
    %v1182 = vadd.s32 %v1174, %v1178
    %v1183 = vrot.slane %v1182, 4
    %v1184 = vadd.s32 %v1182, %v1183
    %v1185 = vrot.slane %v1184, 2
    %v1186 = vadd.s32 %v1184, %v1185
    %v1187 = vrot.slane %v1186, 1
    %v1188 = vadd.s32 %v1186, %v1187
    %v1189 = vadd.s32 %v1175, %v1179
    %v1190 = vrot.slane %v1189, 4
    %v1191 = vadd.s32 %v1189, %v1190
    %v1192 = vrot.slane %v1191, 2
    %v1193 = vadd.s32 %v1191, %v1192
    %v1194 = vrot.slane %v1193, 1
    %v1195 = vadd.s32 %v1193, %v1194
    %v1196 = vadd.s32 %v1176, %v1180
    %v1197 = vrot.slane %v1196, 4
    %v1198 = vadd.s32 %v1196, %v1197
    %v1199 = vrot.slane %v1198, 2
    %v1200 = vadd.s32 %v1198, %v1199
    %v1201 = vrot.slane %v1200, 1
    %v1202 = vadd.s32 %v1200, %v1201
    %v1203 = vadd.s32 %v1177, %v1181
    %v1204 = vrot.slane %v1203, 4
    %v1205 = vadd.s32 %v1203, %v1204
    %v1206 = vrot.slane %v1205, 2
    %v1207 = vadd.s32 %v1205, %v1206
    %v1208 = vrot.slane %v1207, 1
    %v1209 = vadd.s32 %v1207, %v1208
    %v1210 = vcombine.low %v1188, %v1195
    %v1211 = vcombine.low %v1202, %v1209
    %v1213 = vunpack.c.l.s4 1966171168
    %v1214 = vunpack.c.0.s8 %v1213
    %v1215 = vlaneseq
    %v1216 = vshrl.u32 %v1215, 7
    %v1217 = vsub.s32 %v1214, %v1216
    %v1218 = vrot.slane %v1210, %v1217
    %v1220 = vunpack.c.l.s4 1966171168
    %v1221 = vunpack.c.0.s8 %v1220
    %v1222 = vlaneseq
    %v1223 = vshrl.u32 %v1222, 7
    %v1224 = vsub.s32 %v1221, %v1223
    %v1225 = vrot.slane %v1211, %v1224
    %v1226 = vcombine.low %v1218, %v1225
    %v1228 = vunpack.c.l.s4 1966171168
    %v1229 = vunpack.c.0.s8 %v1228
    %v1230 = vlaneseq
    %v1231 = vshrl.u32 %v1230, 7
    %v1232 = vsub.s32 %v1229, %v1231
    %v1233 = vrot.slane %v1226, %v1232
    %v1234 = vlaneseq
    %vm1235 = vcmp.ge.s32.totalorder %v1234, 0
    %vm1236 = vcmp.lt.s32.totalorder %v1234, 512
    %vm1237 = vmand %vm1235, %vm1236
    %1238 = vst.msk [vmem:[#allocation2] sm:$0xf] %vm1237, %v1233
    // Predicated region
    $region30: #{tpu_custom_call.1} parent=1 // pred_check
      _
    $region31: #{tpu_custom_call.1} parent=1 // pred_check_branch
      %1240 = sbr.rel (0) target = $region33
    $region32: #{tpu_custom_call.1} parent=1 // pred_region
      %s1242 = ssub.s32 64, 64
      %1243 = vsyncadd [#allocation3], %s1242
      %s1245 = sshll.u32 [#allocation2], 4
      %s1246 = int_to_ptr.vmem [resolvable:$true] %s1245
      %1248 = dma.vmem_to_hbm [thread:$0]  %s1246, 64, %s7, [#allocation3]
    $region33: #{tpu_custom_call.1} parent=1 // pred_fallthru
      _
    // Predicated region
    $region34: #{tpu_custom_call.1} parent=1 // pred_check
      _
    $region35: #{tpu_custom_call.1} parent=1 // pred_check_branch
      %1250 = sbr.rel (0) target = $region37
    $region36: #{tpu_custom_call.1} parent=1 // pred_region
      %1251 = dma.done [#allocation3], 64
    $region37: #{tpu_custom_call.1} parent=1 // pred_fallthru
      _
    %1252 = vsyncpa [#allocation3], 1

</llo_original>
